<compile_context>
chip_gen: v5e
topology: v5e:2x2
jax: 0.10.0
libtpu: 0.0.40
codegen_flags: <defaults>
</compile_context>

<pallas_src>
import functools

import numpy as np
import jax
import jax.numpy as jnp
from jax import lax
from jax.experimental import pallas as pl
from jax.experimental.pallas import tpu as pltpu


DROP_P = 0.2
BN_EPS = 1e-5


def _hash_u32(x):
    """lowbias32-style integer mix; uint32 in, uint32 out (wraps mod 2^32)."""
    x = x ^ (x >> 16)
    x = x * np.uint32(0x7FEB352D)
    x = x ^ (x >> 15)
    x = x * np.uint32(0x846CA68B)
    x = x ^ (x >> 16)
    return x


def _make_kernel(dout_total, tile_n, drop_p):
    # Python / numpy scalars only: jnp arrays here would be captured as kernel
    # constants, which pallas_call rejects.
    threshold = np.uint32(int(round(drop_p * float(1 << 32))))  # drop if bits < p*2^32
    keep_scale = float(1.0 / (1.0 - drop_p))

    def kernel(seed_ref, x_ref, w_ref, gb_ref, o_ref):
        # ---- Linear: y = x @ W^T (bias cancels exactly in training-mode BN) ----
        # bf16 operands, f32 MXU accumulation.
        y = jnp.dot(x_ref[...], w_ref[...],
                    preferred_element_type=jnp.float32)            # (B, tile_n) f32

        # ---- BatchNorm1d (training mode, biased batch variance) ----
        mean = jnp.mean(y, axis=0, keepdims=True)                  # (1, tile_n)
        yc = y - mean
        var = jnp.mean(yc * yc, axis=0, keepdims=True)             # two-pass variance
        # Fold gamma*rsqrt(var+eps) and the dropout keep-scale into one
        # per-column scale; beta into the shift (cheap (1, tile_n) work only).
        scale = gb_ref[0:1, :] * lax.rsqrt(var + BN_EPS) * keep_scale
        shift = gb_ref[1:2, :] * keep_scale
        z = yc * scale + shift       # = keep_scale * BatchNorm(y); same sign as BN(y)

        # ---- Dropout mask: stateless hash keyed on (seed, row, global col) ----
        seed = seed_ref[0].astype(jnp.uint32)
        col0 = (pl.program_id(0) * tile_n).astype(jnp.uint32)
        rows = lax.broadcasted_iota(jnp.uint32, z.shape, 0)
        cols = lax.broadcasted_iota(jnp.uint32, z.shape, 1) + col0
        gid = rows * np.uint32(dout_total) + cols                  # unique element id
        bits = _hash_u32(gid + seed * np.uint32(0x9E3779B9))
        keep = bits >= threshold

        # ---- Fused ReLU + Dropout (keep_scale > 0, so ReLU commutes with it) ----
        o_ref[...] = jnp.where(keep & (z > 0.0), z, 0.0).astype(o_ref.dtype)

    return kernel


def prepare_params(weight, bias, gamma, beta, *, k_align=128):
    """One-time parameter prep (outside the hot path).

    weight: (Dout, Din), PyTorch nn.Linear layout.  The Linear bias is dropped
    because training-mode BatchNorm1d's mean subtraction cancels it exactly.
    Din is zero-padded to a multiple of `k_align` for aligned MXU K passes.
    """
    del bias
    w = jnp.asarray(weight, jnp.float32)                  # (Dout, Din)
    dout, din = w.shape
    din_pad = ((din + k_align - 1) // k_align) * k_align
    w_t = jnp.zeros((din_pad, dout), jnp.bfloat16)
    w_t = w_t.at[:din, :].set(w.T.astype(jnp.bfloat16))   # (Din_pad, Dout) bf16
    gb = jnp.stack([jnp.asarray(gamma), jnp.asarray(beta)],
                   axis=0).astype(jnp.float32)            # (2, Dout)
    return w_t, gb


@functools.partial(jax.jit, static_argnames=("tile_n", "out_dtype"))
def basic_block_forward(x, w_t, gb, seed, *, tile_n=None, out_dtype=jnp.float32):
    """x: (B, Din); w_t: (Din_pad, Dout) bf16; gb: (2, Dout) f32 -> (B, Dout)."""
    B, din = x.shape
    din_pad, dout = w_t.shape

    if tile_n is None:
        # Fill the 256-wide MXU (v6e/v7x) when possible; 128 floor otherwise.
        tile_n = 256 if dout % 256 == 0 else 128
    tile_n = min(tile_n, dout)
    assert dout % tile_n == 0 and tile_n % 128 == 0, (
        "Dout must be a multiple of 128 (pad params) for lane-dense stores")

    # bf16 once in the wrapper (halves x DMA bytes and the full-block per-tile
    # cast); zero-pad Din to match the padded weight K dimension.
    xb = x.astype(jnp.bfloat16)
    if din_pad > din:
        xb = jnp.pad(xb, ((0, 0), (0, din_pad - din)))

    seed_arr = jnp.reshape(jnp.asarray(seed, dtype=jnp.int32), (1,))
    kernel = _make_kernel(dout, tile_n, DROP_P)

    grid_spec = pltpu.PrefetchScalarGridSpec(
        num_scalar_prefetch=1,                                     # seed -> SMEM
        grid=(dout // tile_n,),
        in_specs=[
            pl.BlockSpec((B, din_pad), lambda j, s: (0, 0)),       # x (resident, bf16)
            pl.BlockSpec((din_pad, tile_n), lambda j, s: (0, j)),  # weight tile (bf16)
            pl.BlockSpec((2, tile_n), lambda j, s: (0, j)),        # packed gamma/beta
        ],
        out_specs=pl.BlockSpec((B, tile_n), lambda j, s: (0, j)),
    )

    # VMEM budget: double-buffered x / W tile / gb tile / out tile + slack.
    out_bytes = np.dtype(out_dtype).itemsize
    need = (2 * B * din_pad * 2 + 2 * din_pad * tile_n * 2
            + 2 * 2 * tile_n * 4 + 2 * B * tile_n * out_bytes)
    vmem_limit = int(min(64 * 2**20, max(24 * 2**20, 2 * need + (2 << 20))))

    return pl.pallas_call(
        kernel,
        out_shape=jax.ShapeDtypeStruct((B, dout), out_dtype),
        grid_spec=grid_spec,
        compiler_params=pltpu.CompilerParams(
            dimension_semantics=("parallel",),                     # independent Dout tiles
            vmem_limit_bytes=vmem_limit),
    )(seed_arr, xb, w_t, gb)


if __name__ == "__main__":
    # Small shapes consistent with BasicBlock(input_dim, output_dim).
    B, INPUT_DIM, OUTPUT_DIM = 16, 64, 256

    key = jax.random.PRNGKey(0)
    kx, kw, kb, kg, kbe = jax.random.split(key, 5)

    # Deterministic parameter init (shapes match nn.Linear / nn.BatchNorm1d).
    bound = 1.0 / (INPUT_DIM ** 0.5)
    weight = jax.random.uniform(kw, (OUTPUT_DIM, INPUT_DIM), jnp.float32,
                                minval=-bound, maxval=bound)       # Linear.weight
    bias = jax.random.uniform(kb, (OUTPUT_DIM,), jnp.float32,
                              minval=-bound, maxval=bound)         # Linear.bias
    gamma = jnp.ones((OUTPUT_DIM,), jnp.float32) \
        + 0.01 * jax.random.normal(kg, (OUTPUT_DIM,), jnp.float32)  # BN weight
    beta = 0.01 * jax.random.normal(kbe, (OUTPUT_DIM,), jnp.float32)  # BN bias

    x = jax.random.normal(kx, (B, INPUT_DIM), jnp.float32)

    w_t, gb = prepare_params(weight, bias, gamma, beta)
    out = basic_block_forward(x, w_t, gb, 42)
    out = jax.block_until_ready(out)

    assert out.shape == (B, OUTPUT_DIM) and out.dtype == jnp.float32
    print("KERNEL_OK")
</pallas_src>

<mosaic_0001>
module attributes {stable_mosaic.version = 11 : i64} {
  func.func @kernel(%arg0: i32, %arg1: memref<1xi32, #tpu.memory_space<smem>>, %arg2: memref<16x128xbf16, #tpu.memory_space<vmem>>, %arg3: memref<128x256xbf16, #tpu.memory_space<vmem>>, %arg4: memref<2x256xf32, #tpu.memory_space<vmem>>, %arg5: memref<16x256xf32, #tpu.memory_space<vmem>>) attributes {dimension_semantics = [#tpu.dimension_semantics<parallel>], iteration_bounds = array<i64: 1>, scalar_prefetch = 1 : i64, scratch_operands = 0 : i64, tpu.core_type = #tpu.core_type<tc>, window_params = [{pipeline_mode = #tpu.pipeline_mode<synchronous>, transform_indices = @transform_0, window_bounds = array<i64: 16, 128>}, {transform_indices = @transform_1, window_bounds = array<i64: 128, 256>}, {transform_indices = @transform_2, window_bounds = array<i64: 2, 256>}, {transform_indices = @transform_3, window_bounds = array<i64: 16, 256>}]} {
    %c0 = arith.constant 0 : index
    %c0_0 = arith.constant 0 : index
    %0 = vector.load %arg2[%c0, %c0_0] : memref<16x128xbf16, #tpu.memory_space<vmem>>, vector<16x128xbf16>
    %c0_1 = arith.constant 0 : index
    %c0_2 = arith.constant 0 : index
    %1 = vector.load %arg3[%c0_1, %c0_2] : memref<128x256xbf16, #tpu.memory_space<vmem>>, vector<128x256xbf16>
    %cst = arith.constant dense<0.000000e+00> : vector<16x256xf32>
    %2 = tpu.matmul %0, %1, %cst {dimension_numbers = #tpu.dot_dimension_numbers<[1], [0], [0], [1], [0, 0, 1, 1], [], []>} : vector<16x128xbf16>, vector<128x256xbf16>, vector<16x256xf32> -> vector<16x256xf32>
    %cst_3 = arith.constant dense<0.000000e+00> : vector<256xf32>
    %3 = vector.multi_reduction <add>, %2, %cst_3 [0] : vector<16x256xf32> to vector<256xf32>
    %4 = vector.shape_cast %3 : vector<256xf32> to vector<1x256xf32>
    %cst_4 = arith.constant 1.600000e+01 : f32
    %5 = vector.broadcast %cst_4 : f32 to vector<1x256xf32>
    %6 = arith.divf %4, %5 : vector<1x256xf32>
    %7 = vector.broadcast %6 : vector<1x256xf32> to vector<16x256xf32>
    %8 = arith.subf %2, %7 : vector<16x256xf32>
    %9 = arith.mulf %8, %8 : vector<16x256xf32>
    %cst_5 = arith.constant dense<0.000000e+00> : vector<256xf32>
    %10 = vector.multi_reduction <add>, %9, %cst_5 [0] : vector<16x256xf32> to vector<256xf32>
    %11 = vector.shape_cast %10 : vector<256xf32> to vector<1x256xf32>
    %cst_6 = arith.constant 1.600000e+01 : f32
    %12 = vector.broadcast %cst_6 : f32 to vector<1x256xf32>
    %13 = arith.divf %11, %12 : vector<1x256xf32>
    %c0_7 = arith.constant 0 : index
    %c0_8 = arith.constant 0 : index
    %14 = vector.load %arg4[%c0_7, %c0_8] : memref<2x256xf32, #tpu.memory_space<vmem>>, vector<1x256xf32>
    %cst_9 = arith.constant 9.99999974E-6 : f32
    %15 = vector.broadcast %cst_9 : f32 to vector<1x256xf32>
    %16 = arith.addf %13, %15 : vector<1x256xf32>
    %17 = math.rsqrt %16 : vector<1x256xf32>
    %18 = arith.mulf %14, %17 : vector<1x256xf32>
    %cst_10 = arith.constant 1.250000e+00 : f32
    %19 = vector.broadcast %cst_10 : f32 to vector<1x256xf32>
    %20 = arith.mulf %18, %19 : vector<1x256xf32>
    %c1 = arith.constant 1 : index
    %c0_11 = arith.constant 0 : index
    %21 = vector.load %arg4[%c1, %c0_11] : memref<2x256xf32, #tpu.memory_space<vmem>>, vector<1x256xf32>
    %cst_12 = arith.constant 1.250000e+00 : f32
    %22 = vector.broadcast %cst_12 : f32 to vector<1x256xf32>
    %23 = arith.mulf %21, %22 : vector<1x256xf32>
    %24 = vector.broadcast %20 : vector<1x256xf32> to vector<16x256xf32>
    %25 = arith.mulf %8, %24 : vector<16x256xf32>
    %26 = vector.broadcast %23 : vector<1x256xf32> to vector<16x256xf32>
    %27 = arith.addf %25, %26 : vector<16x256xf32>
    %c0_13 = arith.constant 0 : index
    %28 = memref.load %arg1[%c0_13] : memref<1xi32, #tpu.memory_space<smem>>
    %c256_i32 = arith.constant 256 : i32
    %29 = arith.muli %arg0, %c256_i32 : i32
    %30 = tpu.iota {dimensions = array<i32: 0>} : vector<16x256xi32>
    %31 = tpu.iota {dimensions = array<i32: 1>} : vector<16x256xi32>
    %32 = vector.broadcast %29 : i32 to vector<16x256xi32>
    %33 = arith.addi %31, %32 : vector<16x256xi32>
    %c256_i32_14 = arith.constant 256 : i32
    %34 = vector.broadcast %c256_i32_14 : i32 to vector<16x256xi32>
    %35 = arith.muli %30, %34 : vector<16x256xi32>
    %36 = arith.addi %35, %33 : vector<16x256xi32>
    %c-1640531527_i32 = arith.constant -1640531527 : i32
    %37 = arith.muli %28, %c-1640531527_i32 : i32
    %38 = vector.broadcast %37 : i32 to vector<16x256xi32>
    %39 = arith.addi %36, %38 : vector<16x256xi32>
    %c16_i32 = arith.constant 16 : i32
    %40 = vector.broadcast %c16_i32 : i32 to vector<16x256xi32>
    %41 = arith.shrui %39, %40 : vector<16x256xi32>
    %42 = arith.xori %39, %41 : vector<16x256xi32>
    %c2146121005_i32 = arith.constant 2146121005 : i32
    %43 = vector.broadcast %c2146121005_i32 : i32 to vector<16x256xi32>
    %44 = arith.muli %42, %43 : vector<16x256xi32>
    %c15_i32 = arith.constant 15 : i32
    %45 = vector.broadcast %c15_i32 : i32 to vector<16x256xi32>
    %46 = arith.shrui %44, %45 : vector<16x256xi32>
    %47 = arith.xori %44, %46 : vector<16x256xi32>
    %c-2073254261_i32 = arith.constant -2073254261 : i32
    %48 = vector.broadcast %c-2073254261_i32 : i32 to vector<16x256xi32>
    %49 = arith.muli %47, %48 : vector<16x256xi32>
    %c16_i32_15 = arith.constant 16 : i32
    %50 = vector.broadcast %c16_i32_15 : i32 to vector<16x256xi32>
    %51 = arith.shrui %49, %50 : vector<16x256xi32>
    %52 = arith.xori %49, %51 : vector<16x256xi32>
    %c858993459_i32 = arith.constant 858993459 : i32
    %53 = vector.broadcast %c858993459_i32 : i32 to vector<16x256xi32>
    %54 = arith.cmpi uge, %52, %53 : vector<16x256xi32>
    %cst_16 = arith.constant 0.000000e+00 : f32
    %55 = vector.broadcast %cst_16 : f32 to vector<16x256xf32>
    %56 = arith.cmpf ogt, %27, %55 : vector<16x256xf32>
    %57 = arith.andi %54, %56 : vector<16x256xi1>
    %cst_17 = arith.constant 0.000000e+00 : f32
    %58 = vector.broadcast %cst_17 : f32 to vector<16x256xf32>
    %59 = arith.select %57, %27, %58 : vector<16x256xi1>, vector<16x256xf32>
    %c0_18 = arith.constant 0 : index
    %c0_19 = arith.constant 0 : index
    %60 = vector.load %arg5[%c0_18, %c0_19] : memref<16x256xf32, #tpu.memory_space<vmem>>, vector<16x256xf32>
    tpu.vector_store %arg5[%c0_18, %c0_19], %59 {strides = array<i32>} : memref<16x256xf32, #tpu.memory_space<vmem>>, vector<16x256xf32>,
    return
  }
  func.func @transform_0(%arg0: i32, %arg1: memref<1xi32, #tpu.memory_space<smem>>) -> (i32, i32) {
    %c0_i32 = arith.constant 0 : i32
    %c0_i32_0 = arith.constant 0 : i32
    %c0_i32_1 = arith.constant 0 : i32
    return %c0_i32, %c0_i32_0 : i32, i32
  }
  func.func @transform_1(%arg0: i32, %arg1: memref<1xi32, #tpu.memory_space<smem>>) -> (i32, i32) {
    %c0_i32 = arith.constant 0 : i32
    %c0_i32_0 = arith.constant 0 : i32
    return %c0_i32, %arg0 : i32, i32
  }
  func.func @transform_2(%arg0: i32, %arg1: memref<1xi32, #tpu.memory_space<smem>>) -> (i32, i32) {
    %c0_i32 = arith.constant 0 : i32
    %c0_i32_0 = arith.constant 0 : i32
    return %c0_i32, %arg0 : i32, i32
  }
  func.func @transform_3(%arg0: i32, %arg1: memref<1xi32, #tpu.memory_space<smem>>) -> (i32, i32) {
    %c0_i32 = arith.constant 0 : i32
    %c0_i32_0 = arith.constant 0 : i32
    return %c0_i32, %arg0 : i32, i32
  }
}

</mosaic_0001>

<llo_original>
// kernel: basic_block_forward.1
$region0: #{basic_block_forward.1}
  #allocation0 [shape = 'u32[]', space=smem, size = 0x4, offset = 0x4, fixed_abs, tag = 'smem constant byte address 0x4 - core index']
  #allocation1 [shape = 'u32[72,128]{1,0:T(1,128)}', space=vmem, size = 0x9000, scoped, tag = 'internal scratch']
  #allocation2 [shape = 's32[1]{0}', space=sflag, size = 0x4, scoped, tag = 'scoped memory for basic_block_forward.1']
  #allocation3 [shape = 's32[1]{0:T(128)S(6)}', space=smem, size = 0x200, scoped, tag = 'prefetched SMEM operand 0']
  %s0 = inlined_call_operand.<no memory space> [shape: s32[1], index: 0, kind: input, shape index: {}]
  %s1 = inlined_call_operand.vmem [shape: bf16[16,128], index: 1, kind: input, shape index: {}]
  %s2 = inlined_call_operand.hbm [shape: bf16[128,256], index: 2, kind: input, shape index: {}]
  %s3 = inlined_call_operand.vmem [shape: f32[2,256], index: 3, kind: input, shape index: {}]
  %s4 = inlined_call_operand.hbm [shape: f32[16,256], index: 4, kind: output, shape index: {}]
  %s5 = sld [smem:[#allocation0]]
  $region26: #{basic_block_forward.1} parent=0
    _
  %s7 = ssub.s32 1, %s5
  %s8 = scalar_select 0, %s7, %s5
  %9 = sst [smem:[#allocation3]] %s0
  $region1: #{basic_block_forward.1} parent=0
    #allocation4 [shape = 'u8[65536]{0}', space=vmem, size = 0x10000, scoped, tag = 'input window, operand 2, single buffered']
    #allocation5 [shape = 's32[1]{0}', space=sflag, size = 0x4, scoped, tag = 'scoped memory for basic_block_forward.1']
    #allocation6 [shape = 's32[1]{0}', space=sflag, size = 0x4, scoped, tag = 'scoped memory for basic_block_forward.1']
    #allocation7 [shape = 'u8[16384]{0}', space=vmem, size = 0x4000, scoped, tag = 'output window, operand 0, single buffered']
    %10 = vsyncpa [#allocation5], 0
    %11 = vsyncpa [#allocation6], 0
    // Predicated region
    $region2: #{basic_block_forward.1} parent=1 // pred_check
      _
    $region3: #{basic_block_forward.1} parent=1 // pred_check_branch
      %13 = sbr.rel (0) target = $region5
    $region4: #{basic_block_forward.1} parent=1 // pred_region
      _
    $region5: #{basic_block_forward.1} parent=1 // pred_fallthru
      _
    // Predicated region
    $region6: #{basic_block_forward.1} parent=1 // pred_check
      _
    $region7: #{basic_block_forward.1} parent=1 // pred_check_branch
      %15 = sbr.rel (0) target = $region9
    $region8: #{basic_block_forward.1} parent=1 // pred_region
      %17 = vsyncadd [#allocation5], 0
      %s18 = sshll.u32 %s2, 4
      %s19 = int_to_ptr.hbm [resolvable:$true] %s18
      %s20 = sshll.u32 [#allocation4], 4
      %s21 = int_to_ptr.vmem [resolvable:$true] %s20
      %26 = dma.hbm_to_vmem [thread:$0]  %s19, 2048, %s21, [#allocation5], 128, 128, 8
    $region9: #{basic_block_forward.1} parent=1 // pred_fallthru
      _
    // Predicated region
    $region10: #{basic_block_forward.1} parent=1 // pred_check
      _
    $region11: #{basic_block_forward.1} parent=1 // pred_check_branch
      %28 = sbr.rel (0) target = $region13
    $region12: #{basic_block_forward.1} parent=1 // pred_region
      _
    $region13: #{basic_block_forward.1} parent=1 // pred_fallthru
      _
    // Predicated region
    $region14: #{basic_block_forward.1} parent=1 // pred_check
      _
    $region15: #{basic_block_forward.1} parent=1 // pred_check_branch
      %30 = sbr.rel (0) target = $region17
    $region16: #{basic_block_forward.1} parent=1 // pred_region
      %32 = dma.done [#allocation5], 2048
    $region17: #{basic_block_forward.1} parent=1 // pred_fallthru
      _
    %v33 = vld [vmem:[%s1] sm:$0xf]
    %v34 = vld [vmem:[%s1 + $0x4] sm:$0xf]
    %v35 = vld [vmem:[#allocation4] sm:$0xff]
    %v36 = vld [vmem:[#allocation4 + $0x8] sm:$0xff]
    %v37 = vld [vmem:[#allocation4 + $0x10] sm:$0xff]
    %v38 = vld [vmem:[#allocation4 + $0x18] sm:$0xff]
    %v39 = vld [vmem:[#allocation4 + $0x20] sm:$0xff]
    %v40 = vld [vmem:[#allocation4 + $0x28] sm:$0xff]
    %v41 = vld [vmem:[#allocation4 + $0x30] sm:$0xff]
    %v42 = vld [vmem:[#allocation4 + $0x38] sm:$0xff]
    %v43 = vld [vmem:[#allocation4 + $0x40] sm:$0xff]
    %v44 = vld [vmem:[#allocation4 + $0x48] sm:$0xff]
    %v45 = vld [vmem:[#allocation4 + $0x50] sm:$0xff]
    %v46 = vld [vmem:[#allocation4 + $0x58] sm:$0xff]
    %v47 = vld [vmem:[#allocation4 + $0x60] sm:$0xff]
    %v48 = vld [vmem:[#allocation4 + $0x68] sm:$0xff]
    %v49 = vld [vmem:[#allocation4 + $0x70] sm:$0xff]
    %v50 = vld [vmem:[#allocation4 + $0x78] sm:$0xff]
    %v53 = vunpack.c.l.b16 %v33
    %v54 = vunpack.c.l.b16 %v34
    %v55 = vpack.c.b16 %v54, %v53
    %v73 = vunpack.c.l.b16 %v35
    %v74 = vunpack.c.h.b16 %v35
    %v75 = vunpack.c.l.b16 %v36
    %v76 = vunpack.c.h.b16 %v36
    %v77 = vunpack.c.l.b16 %v37
    %v78 = vunpack.c.h.b16 %v37
    %v79 = vunpack.c.l.b16 %v38
    %v80 = vunpack.c.h.b16 %v38
    %v81 = vunpack.c.l.b16 %v39
    %v82 = vunpack.c.h.b16 %v39
    %v83 = vunpack.c.l.b16 %v40
    %v84 = vunpack.c.h.b16 %v40
    %v85 = vunpack.c.l.b16 %v41
    %v86 = vunpack.c.h.b16 %v41
    %v87 = vunpack.c.l.b16 %v42
    %v88 = vunpack.c.h.b16 %v42
    %v89 = vunpack.c.l.b16 %v43
    %v90 = vunpack.c.h.b16 %v43
    %v91 = vunpack.c.l.b16 %v44
    %v92 = vunpack.c.h.b16 %v44
    %v93 = vunpack.c.l.b16 %v45
    %v94 = vunpack.c.h.b16 %v45
    %v95 = vunpack.c.l.b16 %v46
    %v96 = vunpack.c.h.b16 %v46
    %v97 = vunpack.c.l.b16 %v47
    %v98 = vunpack.c.h.b16 %v47
    %v99 = vunpack.c.l.b16 %v48
    %v100 = vunpack.c.h.b16 %v48
    %v101 = vunpack.c.l.b16 %v49
    %v102 = vunpack.c.h.b16 %v49
    %v103 = vunpack.c.l.b16 %v50
    %v104 = vunpack.c.h.b16 %v50
    %v105 = vpack.c.b16 %v75, %v73
    %v106 = vpack.c.b16 %v76, %v74
    %v107 = vpack.c.b16 %v79, %v77
    %v108 = vpack.c.b16 %v80, %v78
    %v109 = vpack.c.b16 %v83, %v81
    %v110 = vpack.c.b16 %v84, %v82
    %v111 = vpack.c.b16 %v87, %v85
    %v112 = vpack.c.b16 %v88, %v86
    %v113 = vpack.c.b16 %v91, %v89
    %v114 = vpack.c.b16 %v92, %v90
    %v115 = vpack.c.b16 %v95, %v93
    %v116 = vpack.c.b16 %v96, %v94
    %v117 = vpack.c.b16 %v99, %v97
    %v118 = vpack.c.b16 %v100, %v98
    %v119 = vpack.c.b16 %v103, %v101
    %v120 = vpack.c.b16 %v104, %v102
    %137 = vmatpush.bf16.msra.mxu0 %v119
    %138 = vmatpush.bf16.msra.mxu0 %v117
    %139 = vmatpush.bf16.msra.mxu0 %v115
    %140 = vmatpush.bf16.msra.mxu0 %v113
    %141 = vmatpush.bf16.msra.mxu0 %v111
    %142 = vmatpush.bf16.msra.mxu0 %v109
    %143 = vmatpush.bf16.msra.mxu0 %v107
    %144 = vmatpush.bf16.msra.mxu0 %v105
    %145 = vmatmul.bf16.gmra.mxu0 %v55
    %v146 = vpop.f32.mrf.mxu0
    %v147 = vadd.f32 0.0, %v146
    %v148 = vpop.f32.mrf.mxu0
    %v149 = vadd.f32 0.0, %v148
    %150 = vdwg.mxu0
    %151 = vmatpush.bf16.msra.mxu0 %v120
    %152 = vmatpush.bf16.msra.mxu0 %v118
    %153 = vmatpush.bf16.msra.mxu0 %v116
    %154 = vmatpush.bf16.msra.mxu0 %v114
    %155 = vmatpush.bf16.msra.mxu0 %v112
    %156 = vmatpush.bf16.msra.mxu0 %v110
    %157 = vmatpush.bf16.msra.mxu0 %v108
    %158 = vmatpush.bf16.msra.mxu0 %v106
    %159 = vmatmul.bf16.gmra.mxu0 %v55
    %v160 = vpop.f32.mrf.mxu0
    %v161 = vadd.f32 0.0, %v160
    %v162 = vpop.f32.mrf.mxu0
    %v163 = vadd.f32 0.0, %v162
    %164 = vdwg.mxu0
    %v165 = vadd.f32 %v147, %v149
    %v166 = vrot.slane %v165, 4
    %v167 = vadd.f32 %v165, %v166
    %v168 = vrot.slane %v167, 2
    %v169 = vadd.f32 %v167, %v168
    %v170 = vrot.slane %v169, 1
    %v171 = vadd.f32 %v169, %v170
    %v172 = vadd.f32 %v161, %v163
    %v173 = vrot.slane %v172, 4
    %v174 = vadd.f32 %v172, %v173
    %v175 = vrot.slane %v174, 2
    %v176 = vadd.f32 %v174, %v175
    %v177 = vrot.slane %v176, 1
    %v178 = vadd.f32 %v176, %v177
    %v179 = vrcp.pop 16.0
    %v180 = vmul.f32 16.0, %v179
    %v181 = vsub.f32 1.0, %v180
    %v182 = vmul.f32 %v179, %v181
    %v183 = vadd.f32 %v179, %v182
    %vm184 = vweird.f32 %v179
    %v185 = vsel %vm184, %v179, %v183
    %v186 = vmul.f32 %v171, %v185
    %v187 = vmul.f32 %v178, %v185
    %v188 = vsub.f32 %v147, %v186
    %v189 = vsub.f32 %v161, %v187
    %v190 = vsub.f32 %v149, %v186
    %v191 = vsub.f32 %v163, %v187
    %v192 = vmul.f32 %v188, %v188
    %v193 = vmul.f32 %v189, %v189
    %v194 = vmul.f32 %v190, %v190
    %v195 = vmul.f32 %v191, %v191
    %v196 = vadd.f32 %v192, %v194
    %v197 = vrot.slane %v196, 4
    %v198 = vadd.f32 %v196, %v197
    %v199 = vrot.slane %v198, 2
    %v200 = vadd.f32 %v198, %v199
    %v201 = vrot.slane %v200, 1
    %v202 = vadd.f32 %v200, %v201
    %v203 = vadd.f32 %v193, %v195
    %v204 = vrot.slane %v203, 4
    %v205 = vadd.f32 %v203, %v204
    %v206 = vrot.slane %v205, 2
    %v207 = vadd.f32 %v205, %v206
    %v208 = vrot.slane %v207, 1
    %v209 = vadd.f32 %v207, %v208
    %v210 = vmul.f32 %v202, %v185
    %v211 = vmul.f32 %v209, %v185
    %v212 = vld [vmem:[%s3] ss:$2 sm:$0x3]
    %v213 = vadd.f32 %v210, 1e-05
    %v214 = vadd.f32 %v211, 1e-05
    %v215 = vrsqrt.pop %v213
    %v216 = vmul.f32 %v215, %v213
    %v217 = vmul.f32 %v216, %v215
    %v218 = vmul.f32 0.5, %v217
    %v219 = vsub.f32 1.5, %v218
    %v220 = vmul.f32 %v215, %v219
    %vm221 = vweird.f32 %v213
    %vm222 = vweird.f32 %v215
    %vm223 = vmor %vm221, %vm222
    %v224 = vsel %vm223, %v215, %v220
    %v225 = vrsqrt.pop %v214
    %v226 = vmul.f32 %v225, %v214
    %v227 = vmul.f32 %v226, %v225
    %v228 = vmul.f32 0.5, %v227
    %v229 = vsub.f32 1.5, %v228
    %v230 = vmul.f32 %v225, %v229
    %vm231 = vweird.f32 %v214
    %vm232 = vweird.f32 %v225
    %vm233 = vmor %vm231, %vm232
    %v234 = vsel %vm233, %v225, %v230
    %v237 = vrot.slane %v234, 7
    %vm238 = vcmask 1040384
    %v239 = vsel %vm238, %v224, %v237
    %v241 = vmul.f32 %v212, %v239
    %v242 = vmul.f32 %v241, 1.25
    %s243 = scalar_lea.vmem %s3, 1
    %v244 = vld [vmem:[%s243] ss:$2 sm:$0x3]
    %v245 = vmul.f32 %v244, 1.25
    %v247 = vperm.slane %v242, 0
    %v248 = vperm.slane %v242, 1
    %v251 = vmul.f32 %v188, %v247
    %v252 = vmul.f32 %v189, %v248
    %v253 = vmul.f32 %v190, %v247
    %v254 = vmul.f32 %v191, %v248
    %v256 = vperm.slane %v245, 0
    %v257 = vperm.slane %v245, 1
    %v260 = vadd.f32 %v251, %v256
    %v261 = vadd.f32 %v252, %v257
    %v262 = vadd.f32 %v253, %v256
    %v263 = vadd.f32 %v254, %v257
    %s264 = sld [smem:[#allocation3]]
    %s265 = smul.u32 0, 256
    %v266 = vlaneseq
    %v267 = vshrl.u32 %v266, 7
    %v268 = vadd.s32 %v267, 8
    %v269 = vlaneseq
    %v270 = vand.u32 %v269, 127
    %v271 = vadd.s32 %v270, 128
    %v272 = vstv %s265
    %v273 = vadd.s32 %v270, %v272
    %v274 = vadd.s32 %v271, %v272
    %v275 = vmul.u32 %v267, 256
    %v276 = vmul.u32 %v268, 256
    %v277 = vadd.s32 %v275, %v273
    %v278 = vadd.s32 %v275, %v274
    %v279 = vadd.s32 %v276, %v273
    %v280 = vadd.s32 %v276, %v274
    %s281 = smul.u32 %s264, 2654435769
    %v282 = vstv %s281
    %v283 = vadd.s32 %v277, %v282
    %v284 = vadd.s32 %v278, %v282
    %v285 = vadd.s32 %v279, %v282
    %v286 = vadd.s32 %v280, %v282
    %v287 = vshrl.u32 %v283, 16
    %v288 = vshrl.u32 %v284, 16
    %v289 = vshrl.u32 %v285, 16
    %v290 = vshrl.u32 %v286, 16
    %v291 = vxor.u32 %v283, %v287
    %v292 = vxor.u32 %v284, %v288
    %v293 = vxor.u32 %v285, %v289
    %v294 = vxor.u32 %v286, %v290
    %v295 = vmul.u32 %v291, 2146121005
    %v296 = vmul.u32 %v292, 2146121005
    %v297 = vmul.u32 %v293, 2146121005
    %v298 = vmul.u32 %v294, 2146121005
    %v299 = vshrl.u32 %v295, 15
    %v300 = vshrl.u32 %v296, 15
    %v301 = vshrl.u32 %v297, 15
    %v302 = vshrl.u32 %v298, 15
    %v303 = vxor.u32 %v295, %v299
    %v304 = vxor.u32 %v296, %v300
    %v305 = vxor.u32 %v297, %v301
    %v306 = vxor.u32 %v298, %v302
    %v307 = vmul.u32 %v303, 2221713035
    %v308 = vmul.u32 %v304, 2221713035
    %v309 = vmul.u32 %v305, 2221713035
    %v310 = vmul.u32 %v306, 2221713035
    %v311 = vshrl.u32 %v307, 16
    %v312 = vshrl.u32 %v308, 16
    %v313 = vshrl.u32 %v309, 16
    %v314 = vshrl.u32 %v310, 16
    %v315 = vxor.u32 %v307, %v311
    %v316 = vxor.u32 %v308, %v312
    %v317 = vxor.u32 %v309, %v313
    %v318 = vxor.u32 %v310, %v314
    %v319 = vadd.s32 %v315, 2147483648
    %vm321 = vcmp.ge.s32.totalorder %v319, 3006477107
    %v322 = vadd.s32 %v316, 2147483648
    %vm324 = vcmp.ge.s32.totalorder %v322, 3006477107
    %v325 = vadd.s32 %v317, 2147483648
    %vm327 = vcmp.ge.s32.totalorder %v325, 3006477107
    %v328 = vadd.s32 %v318, 2147483648
    %vm330 = vcmp.ge.s32.totalorder %v328, 3006477107
    %vm331 = vcmp.gt.f32.partialorder %v260, 0.0
    %vm332 = vcmp.gt.f32.partialorder %v261, 0.0
    %vm333 = vcmp.gt.f32.partialorder %v262, 0.0
    %vm334 = vcmp.gt.f32.partialorder %v263, 0.0
    %vm335 = vmand %vm321, %vm331
    %vm336 = vmand %vm324, %vm332
    %vm337 = vmand %vm327, %vm333
    %vm338 = vmand %vm330, %vm334
    %v339 = vsel %vm335, %v260, 0.0
    %v340 = vsel %vm336, %v261, 0.0
    %v341 = vsel %vm337, %v262, 0.0
    %v342 = vsel %vm338, %v263, 0.0
    %343 = vst [vmem:[#allocation7] sm:$0xff] %v339
    %344 = vst [vmem:[#allocation7 + $0x8] sm:$0xff] %v340
    %345 = vst [vmem:[#allocation7 + $0x10] sm:$0xff] %v341
    %346 = vst [vmem:[#allocation7 + $0x18] sm:$0xff] %v342
    // Predicated region
    $region18: #{basic_block_forward.1} parent=1 // pred_check
      _
    $region19: #{basic_block_forward.1} parent=1 // pred_check_branch
      %348 = sbr.rel (0) target = $region21
    $region20: #{basic_block_forward.1} parent=1 // pred_region
      %350 = vsyncadd [#allocation6], 0
      %s351 = sshll.u32 [#allocation7], 4
      %s352 = int_to_ptr.vmem [resolvable:$true] %s351
      %s353 = sshll.u32 %s4, 4
      %s354 = int_to_ptr.hbm [resolvable:$true] %s353
      %359 = dma.vmem_to_hbm [thread:$0]  %s352, 512, %s354, [#allocation6], 256, 256, 16
    $region21: #{basic_block_forward.1} parent=1 // pred_fallthru
      _
    // Predicated region
    $region22: #{basic_block_forward.1} parent=1 // pred_check
      _
    $region23: #{basic_block_forward.1} parent=1 // pred_check_branch
      %361 = sbr.rel (0) target = $region25
    $region24: #{basic_block_forward.1} parent=1 // pred_region
      %363 = dma.done [#allocation6], 512
    $region25: #{basic_block_forward.1} parent=1 // pred_fallthru
      _
    %364 = vsyncpa [#allocation5], 1
    %365 = vsyncpa [#allocation6], 1

</llo_original>
